<compile_context>
chip_gen: v6e
topology: v6e:2x2x1
jax: 0.10.0
libtpu: 0.0.40
codegen_flags: <defaults>
</compile_context>

<pallas_src>
import jax
import jax.numpy as jnp
from jax.experimental import pallas as pl
from jax.experimental.pallas import tpu as pltpu

_LANES = 128
_TWO_PI = 6.283185307179586
_MAX_TILE_ROWS = 512  # input tile 512x128 f32 = 256 KiB; output tile 512 KiB


def _box_muller_kernel(u1_ref, u2_ref, out_ref):
    """Turn two uniform tiles into one tile of 2x as many standard normals."""
    tm = u1_ref.shape[0]
    u1 = u1_ref[...]
    u2 = u2_ref[...]
    # r and theta are shared by both branches -> 2 normals per log/sqrt/trig set.
    r = jnp.sqrt(-2.0 * jnp.log(u1))
    theta = jnp.float32(_TWO_PI) * u2
    # Disjoint row-halves (no per-lane interleave -> no XLU shuffles).
    out_ref[:tm, :] = r * jnp.cos(theta)
    out_ref[tm:, :] = r * jnp.sin(theta)


def dummy_transformer_forward(input_ids, targets=None, *, vocab_size=50, seed=0):
    """Pallas equivalent of DummyTransformer.forward.

    input_ids: int array of shape (batch, seq_len); only its shape is used.
    Returns (logits[batch, seq_len, vocab_size] float32, scalar float32 loss).
    """
    batch_size, seq_len = input_ids.shape
    total = batch_size * seq_len * vocab_size

    # Lane-dense slab: `half_rows` rows of uniforms -> 2*half_rows rows of normals.
    half_rows = pl.cdiv(pl.cdiv(total, _LANES), 2)
    # Row-tile: multiple of 8 sublanes, capped so tiles stay comfortably in VMEM
    # (fits v7x's smaller VMEM; still big enough to amortize per-step overhead).
    tile_rows = min(_MAX_TILE_ROWS, max(8, ((half_rows + 7) // 8) * 8))
    num_tiles = pl.cdiv(half_rows, tile_rows)
    half_rows_padded = num_tiles * tile_rows

    # Uniform draws in the wrapper (see TODO above). minval > 0 keeps log finite.
    key = jax.random.PRNGKey(seed)
    k1, k2 = jax.random.split(key)
    u_shape = (half_rows_padded, _LANES)
    u1 = jax.random.uniform(k1, u_shape, jnp.float32, minval=1e-7, maxval=1.0)
    u2 = jax.random.uniform(k2, u_shape, jnp.float32, minval=0.0, maxval=1.0)

    slab = pl.pallas_call(
        _box_muller_kernel,
        out_shape=jax.ShapeDtypeStruct((2 * half_rows_padded, _LANES), jnp.float32),
        grid=(num_tiles,),
        in_specs=[
            pl.BlockSpec((tile_rows, _LANES), lambda i: (i, 0)),
            pl.BlockSpec((tile_rows, _LANES), lambda i: (i, 0)),
        ],
        out_specs=pl.BlockSpec((2 * tile_rows, _LANES), lambda i: (i, 0)),
        compiler_params=pltpu.CompilerParams(
            dimension_semantics=("parallel",),
        ),
    )(u1, u2)

    # Samples are i.i.d., so any flattening order is a valid torch.randn layout.
    logits = slab.reshape(-1)[:total].reshape(batch_size, seq_len, vocab_size)
    loss = jnp.float32(0.5)
    return logits, loss


if __name__ == "__main__":
    key = jax.random.PRNGKey(0)
    batch, seq_len, vocab_size = 2, 8, 50
    input_ids = jax.random.randint(
        key, (batch, seq_len), 0, vocab_size, dtype=jnp.int32
    )

    logits, loss = dummy_transformer_forward(input_ids, vocab_size=vocab_size, seed=0)
    jax.block_until_ready((logits, loss))

    assert logits.shape == (batch, seq_len, vocab_size), logits.shape
    assert logits.dtype == jnp.float32
    assert loss.shape == ()
    assert float(loss) == 0.5
    # Sanity: samples should look roughly standard-normal (loose bounds).
    assert bool(jnp.isfinite(logits).all())
    assert abs(float(logits.mean())) < 0.5
    assert 0.5 < float(logits.std()) < 1.5

    print("KERNEL_OK")
</pallas_src>

<mosaic_0001>
module attributes {stable_mosaic.version = 11 : i64} {
  func.func @_box_muller_kernel(%arg0: i32, %arg1: memref<8x128xf32, #tpu.memory_space<vmem>>, %arg2: memref<8x128xf32, #tpu.memory_space<vmem>>, %arg3: memref<16x128xf32, #tpu.memory_space<vmem>>) attributes {dimension_semantics = [#tpu.dimension_semantics<parallel>], iteration_bounds = array<i64: 1>, scalar_prefetch = 0 : i64, scratch_operands = 0 : i64, tpu.core_type = #tpu.core_type<tc>, window_params = [{transform_indices = @transform_0, window_bounds = array<i64: 8, 128>}, {transform_indices = @transform_1, window_bounds = array<i64: 8, 128>}, {transform_indices = @transform_2, window_bounds = array<i64: 16, 128>}]} {
    %c0 = arith.constant 0 : index
    %c0_0 = arith.constant 0 : index
    %0 = vector.load %arg1[%c0, %c0_0] : memref<8x128xf32, #tpu.memory_space<vmem>>, vector<8x128xf32>
    %c0_1 = arith.constant 0 : index
    %c0_2 = arith.constant 0 : index
    %1 = vector.load %arg2[%c0_1, %c0_2] : memref<8x128xf32, #tpu.memory_space<vmem>>, vector<8x128xf32>
    %2 = math.log %0 : vector<8x128xf32>
    %cst = arith.constant -2.000000e+00 : f32
    %3 = vector.broadcast %cst : f32 to vector<8x128xf32>
    %4 = arith.mulf %3, %2 : vector<8x128xf32>
    %5 = math.sqrt %4 : vector<8x128xf32>
    %cst_3 = arith.constant 6.28318548 : f32
    %6 = vector.broadcast %cst_3 : f32 to vector<8x128xf32>
    %7 = arith.mulf %6, %1 : vector<8x128xf32>
    %8 = math.cos %7 : vector<8x128xf32>
    %9 = arith.mulf %5, %8 : vector<8x128xf32>
    %c0_4 = arith.constant 0 : index
    %c0_5 = arith.constant 0 : index
    %10 = vector.load %arg3[%c0_4, %c0_5] : memref<16x128xf32, #tpu.memory_space<vmem>>, vector<8x128xf32>
    tpu.vector_store %arg3[%c0_4, %c0_5], %9 {strides = array<i32>} : memref<16x128xf32, #tpu.memory_space<vmem>>, vector<8x128xf32>,
    %11 = math.sin %7 : vector<8x128xf32>
    %12 = arith.mulf %5, %11 : vector<8x128xf32>
    %c8 = arith.constant 8 : index
    %c0_6 = arith.constant 0 : index
    %13 = vector.load %arg3[%c8, %c0_6] : memref<16x128xf32, #tpu.memory_space<vmem>>, vector<8x128xf32>
    tpu.vector_store %arg3[%c8, %c0_6], %12 {strides = array<i32>} : memref<16x128xf32, #tpu.memory_space<vmem>>, vector<8x128xf32>,
    return
  }
  func.func @transform_0(%arg0: i32) -> (i32, i32) {
    %c0_i32 = arith.constant 0 : i32
    %c0_i32_0 = arith.constant 0 : i32
    return %arg0, %c0_i32 : i32, i32
  }
  func.func @transform_1(%arg0: i32) -> (i32, i32) {
    %c0_i32 = arith.constant 0 : i32
    %c0_i32_0 = arith.constant 0 : i32
    return %arg0, %c0_i32 : i32, i32
  }
  func.func @transform_2(%arg0: i32) -> (i32, i32) {
    %c0_i32 = arith.constant 0 : i32
    %c0_i32_0 = arith.constant 0 : i32
    return %arg0, %c0_i32 : i32, i32
  }
}

</mosaic_0001>

<llo_original>
// kernel: tpu_custom_call.1
$region0: #{tpu_custom_call.1}
  #allocation0 [shape = 'u32[]', space=smem, size = 0x4, offset = 0x4, fixed_abs, tag = 'smem constant byte address 0x4 - core index']
  #allocation1 [shape = 'u32[144,128]{1,0:T(1,128)}', space=vmem, size = 0x12000, scoped, tag = 'internal scratch']
  %s0 = inlined_call_operand.hbm [shape: f32[8,128], index: 0, kind: input, shape index: {}]
  %s1 = inlined_call_operand.hbm [shape: f32[8,128], index: 1, kind: input, shape index: {}]
  %s2 = inlined_call_operand.hbm [shape: f32[16,128], index: 2, kind: output, shape index: {}]
  %s3 = sld [smem:[#allocation0]]
  $region26: #{tpu_custom_call.1} parent=0
    _
  %s5 = ssub.s32 1, %s3
  %s6 = scalar_select 0, %s5, %s3
  $region1: #{tpu_custom_call.1} parent=0
    #allocation2 [shape = 'u8[4096]{0}', space=vmem, size = 0x1000, scoped, tag = 'input window, operand 0, single buffered']
    #allocation3 [shape = 's32[1]{0}', space=sflag, size = 0x4, scoped, tag = 'scoped memory for tpu_custom_call.1']
    #allocation4 [shape = 's32[1]{0}', space=sflag, size = 0x4, scoped, tag = 'scoped memory for tpu_custom_call.1']
    #allocation5 [shape = 'u8[4096]{0}', space=vmem, size = 0x1000, scoped, tag = 'input window, operand 1, single buffered']
    #allocation6 [shape = 's32[1]{0}', space=sflag, size = 0x4, scoped, tag = 'scoped memory for tpu_custom_call.1']
    #allocation7 [shape = 'u8[8192]{0}', space=vmem, size = 0x2000, scoped, tag = 'output window, operand 0, single buffered']
    %7 = vsyncpa [#allocation3], 0
    %8 = vsyncpa [#allocation6], 0
    %9 = vsyncpa [#allocation4], 0
    // Predicated region
    $region2: #{tpu_custom_call.1} parent=1 // pred_check
      _
    $region3: #{tpu_custom_call.1} parent=1 // pred_check_branch
      %11 = sbr.rel (0) target = $region5
    $region4: #{tpu_custom_call.1} parent=1 // pred_region
      %s13 = ssub.s32 128, 128
      %14 = vsyncadd [#allocation3], %s13
      %s16 = sshll.u32 [#allocation2], 4
      %s17 = int_to_ptr.vmem [resolvable:$true] %s16
      %19 = dma.hbm_to_vmem [thread:$0]  %s0, 128, %s17, [#allocation3]
    $region5: #{tpu_custom_call.1} parent=1 // pred_fallthru
      _
    // Predicated region
    $region6: #{tpu_custom_call.1} parent=1 // pred_check
      _
    $region7: #{tpu_custom_call.1} parent=1 // pred_check_branch
      %21 = sbr.rel (0) target = $region9
    $region8: #{tpu_custom_call.1} parent=1 // pred_region
      %s23 = ssub.s32 128, 128
      %24 = vsyncadd [#allocation6], %s23
      %s26 = sshll.u32 [#allocation5], 4
      %s27 = int_to_ptr.vmem [resolvable:$true] %s26
      %29 = dma.hbm_to_vmem [thread:$0]  %s1, 128, %s27, [#allocation6]
    $region9: #{tpu_custom_call.1} parent=1 // pred_fallthru
      _
    // Predicated region
    $region10: #{tpu_custom_call.1} parent=1 // pred_check
      _
    $region11: #{tpu_custom_call.1} parent=1 // pred_check_branch
      %31 = sbr.rel (0) target = $region13
    $region12: #{tpu_custom_call.1} parent=1 // pred_region
      %32 = dma.done [#allocation3], 128
    $region13: #{tpu_custom_call.1} parent=1 // pred_fallthru
      _
    // Predicated region
    $region14: #{tpu_custom_call.1} parent=1 // pred_check
      _
    $region15: #{tpu_custom_call.1} parent=1 // pred_check_branch
      %34 = sbr.rel (0) target = $region17
    $region16: #{tpu_custom_call.1} parent=1 // pred_region
      %35 = dma.done [#allocation6], 128
    $region17: #{tpu_custom_call.1} parent=1 // pred_fallthru
      _
    %v36 = vld [vmem:[#allocation2] sm:$0xff]
    %v37 = vld [vmem:[#allocation5] sm:$0xff]
    %v38 = vlog2.pop %v36
    %v39 = vmul.f32 %v38, 0.6931472
    %v40 = vmul.f32 %v39, -2.0
    %v41 = vrsqrt.pop %v40
    %v42 = vmul.f32 %v40, %v41
    %vm43 = vcmp.eq.f32.partialorder %v40, inf
    %v44 = vsel %vm43, %v40, %v42
    %vm45 = vcmp.eq.f32.partialorder %v40, 0.0
    %v46 = vand.u32 %v40, 2147483648
    %v47 = vsel %vm45, %v46, %v44
    %v48 = vmul.f32 %v37, 6.2831855
    %v49 = vand.u32 2147483647, %v48
    %vm50 = vcmp.le.f32.partialorder %v49, 0.7853982
    %vm51 = vcmp.lt.s32.totalorder %v48, 0
    %v52 = vand.u32 %v48, 2139095040
    %v53 = vshrl.u32 %v52, 23
    %v54 = vsub.s32 %v53, 127
    %v55 = vand.u32 2147483647, %v48
    %v56 = vand.u32 %v55, 8388607
    %v57 = vor.u32 %v56, 8388608
    %v58 = vsub.s32 0, %v57
    %v59 = vadd.s32 %v54, 1
    %vm60 = vcmp.gt.s32.totalorder %v59, 0
    %v61 = vsel %vm60, %v59, 0
    %v62 = vshrl.u32 %v61, 5
    %v63 = vand.u32 %v61, 31
    %v64 = vsub.s32 32, %v63
    %v65 = vshrl.u32 683565275, %v64
    %v66 = vshll.u32 683565275, %v63
    %v67 = vshrl.u32 2475754826, %v64
    %v68 = vor.u32 %v66, %v67
    %v69 = vshll.u32 2475754826, %v63
    %v70 = vshrl.u32 2131351028, %v64
    %v71 = vor.u32 %v69, %v70
    %v72 = vshll.u32 2131351028, %v63
    %v73 = vshrl.u32 2102212464, %v64
    %v74 = vor.u32 %v72, %v73
    %v75 = vshll.u32 2102212464, %v63
    %v76 = vshrl.u32 920167782, %v64
    %v77 = vor.u32 %v75, %v76
    %v78 = vshll.u32 920167782, %v63
    %v79 = vshrl.u32 1326507024, %v64
    %v80 = vor.u32 %v78, %v79
    %vm81 = vcmp.lt.s32.totalorder %v62, 1
    %vm82 = vcmp.lt.s32.totalorder %v62, 2
    %vm83 = vcmp.lt.s32.totalorder %v62, 3
    %vm84 = vcmp.lt.s32.totalorder %v62, 4
    %v85 = vsel %vm81, %v65, %v68
    %v86 = vsel %vm84, %v74, 2102212464
    %v87 = vsel %vm83, %v71, %v86
    %v88 = vsel %vm82, %v85, %v87
    %v89 = vsel %vm81, %v68, %v71
    %v90 = vsel %vm84, %v77, 920167782
    %v91 = vsel %vm83, %v74, %v90
    %v92 = vsel %vm82, %v89, %v91
    %v93 = vsel %vm81, %v71, %v74
    %v94 = vsel %vm84, %v80, 1326507024
    %v95 = vsel %vm83, %v77, %v94
    %v96 = vsel %vm82, %v93, %v95
    %v97 = vshll.u32 %v57, 8
    %v98 = vmul.u32.u64.compose %v97, %v96
    %v99 = vextract.low.u32 %v98
    %v100 = vextract.high.u32 %v98
    %v101 = vmul.u32.u64.compose %v97, %v92
    %v102 = vextract.low.u32 %v101
    %v103 = vextract.high.u32 %v101
    %v104 = vmul.u32 %v97, %v88
    %v105 = vadd.s32 %v100, %v102
    %vm106 = vc.u32 %v100, %v102
    %v107 = vadd.s32 %v103, 1
    %v108 = vsel %vm106, %v107, %v103
    %v109 = vadd.s32 %v104, %v108
    %v110 = vadd.s32 %v109, 536870912
    %v111 = vshrl.u32 %v110, 30
    %v112 = vshll.u32 %v111, 30
    %v113 = vsub.s32 %v109, %v112
    %vm114 = vcmp.lt.s32.totalorder %v113, 0
    %v115 = vsub.s32 0, %v113
    %v116 = vsel %vm114, %v115, %v113
    %v117 = vclz %v116
    %v118 = vsub.s32 %v117, 2
    %vm119 = vcmp.gt.s32.totalorder 0, %v118
    %v120 = vsel %vm119, 0, %v118
    %v121 = vsub.s32 32, %v120
    %v122 = vshll.u32 %v113, %v120
    %v123 = vshrl.u32 %v105, %v121
    %v124 = vor.u32 %v122, %v123
    %v125 = vsub.s32 4294967266, %v120
    %v126 = vadd.s32 %v125, 127
    %v127 = vshll.u32 %v126, 23
    %v128 = vor.u32 4788187, %v127
    %v129 = vand.u32 2147483647, %v128
    %v131 = vcvt.s32.f32 %v124
    %v132 = vmul.f32 %v131, %v129
    %v133 = vxor.u32 %v132, 2147483648
    %v134 = vsel %vm51, %v133, %v132
    %v135 = vsub.s32 4, %v111
    %v136 = vsel %vm51, %v135, %v111
    %v137 = vsel %vm50, %v48, %v134
    %v138 = vsel %vm50, 0, %v136
    %v139 = vcosq.f32.pop %v137
    %v140 = vsinq.f32.pop %v137
    %vm141 = vweird.f32 %v48
    %v142 = vand.u32 %v138, 3
    %vm143 = vcmp.lt.s32.totalorder %v142, 2
    %vm144 = vcmp.eq.s32.totalorder %v142, 0
    %v145 = vxor.u32 %v140, 2147483648
    %v146 = vsel %vm144, %v139, %v145
    %vm147 = vcmp.eq.s32.totalorder %v142, 2
    %v148 = vxor.u32 %v139, 2147483648
    %v149 = vsel %vm147, %v148, %v140
    %v150 = vsel %vm143, %v146, %v149
    %v151 = vsel %vm141, nan, %v150
    %v152 = vmul.f32 %v47, %v151
    %153 = vst [vmem:[#allocation7] sm:$0xff] %v152
    %v154 = vand.u32 2147483647, %v48
    %vm155 = vcmp.le.f32.partialorder %v154, 0.7853982
    %vm156 = vcmp.lt.s32.totalorder %v48, 0
    %v157 = vand.u32 %v48, 2139095040
    %v158 = vshrl.u32 %v157, 23
    %v159 = vsub.s32 %v158, 127
    %v160 = vand.u32 2147483647, %v48
    %v161 = vand.u32 %v160, 8388607
    %v162 = vor.u32 %v161, 8388608
    %v163 = vsub.s32 0, %v162
    %v164 = vadd.s32 %v159, 1
    %vm165 = vcmp.gt.s32.totalorder %v164, 0
    %v166 = vsel %vm165, %v164, 0
    %v167 = vshrl.u32 %v166, 5
    %v168 = vand.u32 %v166, 31
    %v169 = vsub.s32 32, %v168
    %v170 = vshrl.u32 683565275, %v169
    %v171 = vshll.u32 683565275, %v168
    %v172 = vshrl.u32 2475754826, %v169
    %v173 = vor.u32 %v171, %v172
    %v174 = vshll.u32 2475754826, %v168
    %v175 = vshrl.u32 2131351028, %v169
    %v176 = vor.u32 %v174, %v175
    %v177 = vshll.u32 2131351028, %v168
    %v178 = vshrl.u32 2102212464, %v169
    %v179 = vor.u32 %v177, %v178
    %v180 = vshll.u32 2102212464, %v168
    %v181 = vshrl.u32 920167782, %v169
    %v182 = vor.u32 %v180, %v181
    %v183 = vshll.u32 920167782, %v168
    %v184 = vshrl.u32 1326507024, %v169
    %v185 = vor.u32 %v183, %v184
    %vm186 = vcmp.lt.s32.totalorder %v167, 1
    %vm187 = vcmp.lt.s32.totalorder %v167, 2
    %vm188 = vcmp.lt.s32.totalorder %v167, 3
    %vm189 = vcmp.lt.s32.totalorder %v167, 4
    %v190 = vsel %vm186, %v170, %v173
    %v191 = vsel %vm189, %v179, 2102212464
    %v192 = vsel %vm188, %v176, %v191
    %v193 = vsel %vm187, %v190, %v192
    %v194 = vsel %vm186, %v173, %v176
    %v195 = vsel %vm189, %v182, 920167782
    %v196 = vsel %vm188, %v179, %v195
    %v197 = vsel %vm187, %v194, %v196
    %v198 = vsel %vm186, %v176, %v179
    %v199 = vsel %vm189, %v185, 1326507024
    %v200 = vsel %vm188, %v182, %v199
    %v201 = vsel %vm187, %v198, %v200
    %v202 = vshll.u32 %v162, 8
    %v203 = vmul.u32.u64.compose %v202, %v201
    %v204 = vextract.low.u32 %v203
    %v205 = vextract.high.u32 %v203
    %v206 = vmul.u32.u64.compose %v202, %v197
    %v207 = vextract.low.u32 %v206
    %v208 = vextract.high.u32 %v206
    %v209 = vmul.u32 %v202, %v193
    %v210 = vadd.s32 %v205, %v207
    %vm211 = vc.u32 %v205, %v207
    %v212 = vadd.s32 %v208, 1
    %v213 = vsel %vm211, %v212, %v208
    %v214 = vadd.s32 %v209, %v213
    %v215 = vadd.s32 %v214, 536870912
    %v216 = vshrl.u32 %v215, 30
    %v217 = vshll.u32 %v216, 30
    %v218 = vsub.s32 %v214, %v217
    %vm219 = vcmp.lt.s32.totalorder %v218, 0
    %v220 = vsub.s32 0, %v218
    %v221 = vsel %vm219, %v220, %v218
    %v222 = vclz %v221
    %v223 = vsub.s32 %v222, 2
    %vm224 = vcmp.gt.s32.totalorder 0, %v223
    %v225 = vsel %vm224, 0, %v223
    %v226 = vsub.s32 32, %v225
    %v227 = vshll.u32 %v218, %v225
    %v228 = vshrl.u32 %v210, %v226
    %v229 = vor.u32 %v227, %v228
    %v230 = vsub.s32 4294967266, %v225
    %v231 = vadd.s32 %v230, 127
    %v232 = vshll.u32 %v231, 23
    %v233 = vor.u32 4788187, %v232
    %v234 = vand.u32 2147483647, %v233
    %v236 = vcvt.s32.f32 %v229
    %v237 = vmul.f32 %v236, %v234
    %v238 = vxor.u32 %v237, 2147483648
    %v239 = vsel %vm156, %v238, %v237
    %v240 = vsub.s32 4, %v216
    %v241 = vsel %vm156, %v240, %v216
    %v242 = vsel %vm155, %v48, %v239
    %v243 = vsel %vm155, 0, %v241
    %v244 = vcosq.f32.pop %v242
    %v245 = vsinq.f32.pop %v242
    %vm246 = vweird.f32 %v48
    %v247 = vadd.s32 %v243, 3
    %v248 = vand.u32 %v247, 3
    %vm249 = vcmp.lt.s32.totalorder %v248, 2
    %vm250 = vcmp.eq.s32.totalorder %v248, 0
    %v251 = vxor.u32 %v245, 2147483648
    %v252 = vsel %vm250, %v244, %v251
    %vm253 = vcmp.eq.s32.totalorder %v248, 2
    %v254 = vxor.u32 %v244, 2147483648
    %v255 = vsel %vm253, %v254, %v245
    %v256 = vsel %vm249, %v252, %v255
    %v257 = vsel %vm246, nan, %v256
    %v258 = vmul.f32 %v47, %v257
    %259 = vst [vmem:[#allocation7 + $0x8] sm:$0xff] %v258
    // Predicated region
    $region18: #{tpu_custom_call.1} parent=1 // pred_check
      _
    $region19: #{tpu_custom_call.1} parent=1 // pred_check_branch
      %261 = sbr.rel (0) target = $region21
    $region20: #{tpu_custom_call.1} parent=1 // pred_region
      %s263 = ssub.s32 256, 256
      %264 = vsyncadd [#allocation4], %s263
      %s265 = sshll.u32 [#allocation7], 4
      %s266 = int_to_ptr.vmem [resolvable:$true] %s265
      %271 = dma.vmem_to_hbm [thread:$0]  %s266, 256, %s2, [#allocation4], 128, 128, 8
    $region21: #{tpu_custom_call.1} parent=1 // pred_fallthru
      _
    // Predicated region
    $region22: #{tpu_custom_call.1} parent=1 // pred_check
      _
    $region23: #{tpu_custom_call.1} parent=1 // pred_check_branch
      %273 = sbr.rel (0) target = $region25
    $region24: #{tpu_custom_call.1} parent=1 // pred_region
      %274 = dma.done [#allocation4], 256
    $region25: #{tpu_custom_call.1} parent=1 // pred_fallthru
      _
    %275 = vsyncpa [#allocation3], 1
    %276 = vsyncpa [#allocation6], 1
    %277 = vsyncpa [#allocation4], 1

</llo_original>
